<compile_context>
chip_gen: v7x
topology: tpu7x:2x2x1
jax: 0.10.0
libtpu: 0.0.40
codegen_flags: <defaults>
</compile_context>

<pallas_src>
import jax
import jax.numpy as jnp
from jax.experimental import pallas as pl
from jax.experimental.pallas import tpu as pltpu


_LANE = 128
_SUBLANE = 8
_VMEM_BUDGET = 40 * 1024 * 1024   # tile-size budget: safe inside v7x's 64 MiB physical VMEM
_VMEM_LIMIT = 48 * 1024 * 1024    # scoped VMEM limit handed to Mosaic (also > v5e's 16 MiB default)


def _round_up(x, m):
    return ((x + m - 1) // m) * m


def _cdiv(a, b):
    return -(-a // b)


# --------------------------------------------------------------------------
# Kernel
# --------------------------------------------------------------------------
def _mlp_kernel(x_ref, w1_ref, t1_ref, w2_ref, t2_ref, w3_ref, b3_ref, o_ref):
    """fc1(+bn1)+relu -> fc2(+bn2)+relu -> fc3 for one batch tile."""
    # dropout2d is identity in eval mode.
    x = x_ref[...].astype(w1_ref.dtype)

    # fc1 + folded bn1 + relu  (f32 accumulate + f32 epilogue)
    h1 = jnp.dot(x, w1_ref[...], preferred_element_type=jnp.float32)
    h1 = jnp.maximum(h1 + t1_ref[...], 0.0)

    # fc2 + folded bn2 + relu
    h2 = jnp.dot(h1.astype(w2_ref.dtype), w2_ref[...],
                 preferred_element_type=jnp.float32)
    h2 = jnp.maximum(h2 + t2_ref[...], 0.0)

    # fc3
    out = jnp.dot(h2.astype(w3_ref.dtype), w3_ref[...],
                  preferred_element_type=jnp.float32) + b3_ref[...]
    o_ref[...] = out.astype(o_ref.dtype)


# --------------------------------------------------------------------------
# Wrapper
# --------------------------------------------------------------------------
def class_net_small_image_forward(x, kparams, *, tile_m=4096, out_dtype=None):
    """x: [B, input_size].  kparams: output of fold_and_pad_params.

    For the bandwidth-optimal path on v5e/v6e/v7x, pass bf16 `x` (cast at the
    producer) and compute_dtype=bf16 params; the output dtype follows x.dtype
    unless overridden.
    """
    B, K = x.shape
    w1, t1 = kparams["w1"], kparams["t1"]
    w2, t2 = kparams["w2"], kparams["t2"]
    w3, b3 = kparams["w3"], kparams["b3"]
    n_class = kparams["n_class"]
    if K != w1.shape[0]:
        raise ValueError(f"input feature dim {K} != folded weight dim {w1.shape[0]}")

    Hp = w1.shape[1]                  # padded hidden (128)
    Np = w3.shape[1]                  # padded output features (128)
    out_dtype = x.dtype if out_dtype is None else out_dtype

    x_item = jnp.dtype(x.dtype).itemsize
    o_item = jnp.dtype(out_dtype).itemsize
    w_bytes = sum(int(a.size) * a.dtype.itemsize
                  for a in (w1, t1, w2, t2, w3, b3))

    # --- batch tile selection -------------------------------------------------
    # (a) cap at ~ceil(B/2) (rounded to sublanes) so nb >= 2 and the "parallel"
    #     batch axis can feed both TensorCores on v7x (no effect for huge B);
    # (b) cap by a VMEM budget: double-buffered x/out tiles + f32 h1/h2 temps
    #     + the (double-buffered, tiny) resident weights must fit.
    tm = max(_SUBLANE, min(tile_m, _round_up(_cdiv(B, 2), _SUBLANE)))
    per_row = 2 * K * x_item + 2 * Np * o_item + 2 * Hp * 4
    fixed = 2 * w_bytes + (1 << 20)
    tm_vmem = max(_SUBLANE,
                  ((_VMEM_BUDGET - fixed) // per_row) // _SUBLANE * _SUBLANE)
    tm = min(tm, tm_vmem)
    nb = _cdiv(B, tm)                 # partial last tile handled by Pallas masking

    flops = 2 * B * (K * Hp + Hp * Hp + Hp * Np)
    bytes_accessed = B * K * x_item + w_bytes + B * Np * o_item

    weight_spec = lambda a: pl.BlockSpec(a.shape, lambda i: (0, 0))

    out_padded = pl.pallas_call(
        _mlp_kernel,
        out_shape=jax.ShapeDtypeStruct((B, Np), out_dtype),
        grid=(nb,),
        in_specs=[
            pl.BlockSpec((tm, K), lambda i: (i, 0)),    # x tile (pipelined)
            weight_spec(w1), weight_spec(t1),           # VMEM-resident weights
            weight_spec(w2), weight_spec(t2),
            weight_spec(w3), weight_spec(b3),
        ],
        out_specs=pl.BlockSpec((tm, Np), lambda i: (i, 0)),
        compiler_params=pltpu.CompilerParams(
            dimension_semantics=("parallel",),
            vmem_limit_bytes=_VMEM_LIMIT),
        cost_estimate=pl.CostEstimate(flops=flops, transcendentals=0,
                                      bytes_accessed=bytes_accessed),
    )(x, w1, t1, w2, t2, w3, b3)

    return out_padded[:, :n_class]


# --------------------------------------------------------------------------
# Parameter construction (matches PyTorch module shapes / default init)
# --------------------------------------------------------------------------
def init_params(key, input_size=128, n_class=10):
    """Raw (un-folded, un-padded) params mirroring ClassNetSmallImage."""
    ks = jax.random.split(key, 6)

    def linear(kw, kb, fan_in, fan_out):
        bound = 1.0 / jnp.sqrt(fan_in)
        w = jax.random.uniform(kw, (fan_in, fan_out), jnp.float32, -bound, bound)
        b = jax.random.uniform(kb, (fan_out,), jnp.float32, -bound, bound)
        return w, b

    w1, b1 = linear(ks[0], ks[1], input_size, 100)
    w2, b2 = linear(ks[2], ks[3], 100, 100)
    w3, b3 = linear(ks[4], ks[5], 100, n_class)

    def bn_default(h):
        return dict(gamma=jnp.ones((h,), jnp.float32),
                    beta=jnp.zeros((h,), jnp.float32),
                    mean=jnp.zeros((h,), jnp.float32),
                    var=jnp.ones((h,), jnp.float32))

    return dict(w1=w1, b1=b1, bn1=bn_default(100),
                w2=w2, b2=b2, bn2=bn_default(100),
                w3=w3, b3=b3, n_class=n_class, input_size=input_size)


def fold_and_pad_params(raw, compute_dtype=jnp.float32, eps=1e-5):
    """Fold inference-mode BN into the Linears; pad hidden/output dims to 128 lanes.

    The input feature dim is NOT padded: x streams through the kernel unpadded
    (no extra HBM pass over the activation); fc1 contracts over input_size as-is.
    Use compute_dtype=bf16 on v5e (no native f32 MXU path) and as the fast path
    on v6e/v7x; the +shift / ReLU epilogue always stays f32.
    """
    def fold(w, b, bn):
        scale = bn["gamma"] / jnp.sqrt(bn["var"] + eps)       # (H,)
        w_f = w * scale[None, :]                              # scale into weights
        t = (b - bn["mean"]) * scale + bn["beta"]             # shift absorbs bias
        return w_f, t

    def pad_w(w, rows, cols):
        return jnp.pad(w, ((0, rows - w.shape[0]), (0, cols - w.shape[1])))

    def pad_v(v, cols):
        return jnp.pad(v, (0, cols - v.shape[0])).reshape(1, cols)

    K = raw["input_size"]
    n_class = raw["n_class"]
    Hp = _round_up(100, _LANE)
    Np = _round_up(n_class, _LANE)

    w1f, t1 = fold(raw["w1"], raw["b1"], raw["bn1"])
    w2f, t2 = fold(raw["w2"], raw["b2"], raw["bn2"])

    return dict(
        w1=pad_w(w1f, K, Hp).astype(compute_dtype),
        t1=pad_v(t1, Hp).astype(jnp.float32),                 # epilogue stays f32
        w2=pad_w(w2f, Hp, Hp).astype(compute_dtype),
        t2=pad_v(t2, Hp).astype(jnp.float32),
        w3=pad_w(raw["w3"], Hp, Np).astype(compute_dtype),
        b3=pad_v(raw["b3"], Np).astype(jnp.float32),
        n_class=n_class,
    )


def reference_forward(x, raw, eps=1e-5):
    """Pure-JAX reference with the PyTorch module's math (eval mode)."""
    def bn(h, p):
        return (h - p["mean"]) / jnp.sqrt(p["var"] + eps) * p["gamma"] + p["beta"]

    h1 = jnp.maximum(bn(x @ raw["w1"] + raw["b1"], raw["bn1"]), 0.0)
    h2 = jnp.maximum(bn(h1 @ raw["w2"] + raw["b2"], raw["bn2"]), 0.0)
    return h2 @ raw["w3"] + raw["b3"]


# --------------------------------------------------------------------------
if __name__ == "__main__":
    key = jax.random.PRNGKey(0)
    k_x, k_p = jax.random.split(key)

    B, input_size, n_class = 2, 128, 10
    x = jax.random.normal(k_x, (B, input_size), jnp.float32)
    raw = init_params(k_p, input_size=input_size, n_class=n_class)
    ref = reference_forward(x, raw)

    # f32 path: bitwise-close to the reference
    kp32 = fold_and_pad_params(raw, compute_dtype=jnp.float32)
    out32 = jax.block_until_ready(class_net_small_image_forward(x, kp32))
    assert out32.shape == (B, n_class)
    assert jnp.allclose(out32, ref, atol=1e-4, rtol=1e-4)

    # bf16 end-to-end I/O (recommended production path on v5e/v6e/v7x):
    # bf16 x read, bf16 weights, bf16 output write; f32 accumulate + epilogue.
    kpbf = fold_and_pad_params(raw, compute_dtype=jnp.bfloat16)
    xbf = x.astype(jnp.bfloat16)      # cast at the producer, not in the wrapper
    outbf = jax.block_until_ready(class_net_small_image_forward(xbf, kpbf))
    assert outbf.shape == (B, n_class)
    assert outbf.dtype == jnp.bfloat16
    assert jnp.allclose(outbf.astype(jnp.float32), ref, atol=2e-1, rtol=2e-1)

    # Ragged batch: exercises the batch grid and the masked partial last tile
    # (no wrapper-side padding pass over x).
    xb = jax.random.normal(jax.random.PRNGKey(1), (200, input_size), jnp.float32)
    outb = jax.block_until_ready(
        class_net_small_image_forward(xb, kp32, tile_m=64))
    assert outb.shape == (200, n_class)
    assert jnp.allclose(outb, reference_forward(xb, raw), atol=1e-4, rtol=1e-4)

    print("KERNEL_OK")
</pallas_src>

<mosaic_0001>
module attributes {stable_mosaic.version = 11 : i64} {
  func.func @_mlp_kernel(%arg0: i32, %arg1: memref<8x128xf32, #tpu.memory_space<vmem>>, %arg2: memref<128x128xf32, #tpu.memory_space<vmem>>, %arg3: memref<1x128xf32, #tpu.memory_space<vmem>>, %arg4: memref<128x128xf32, #tpu.memory_space<vmem>>, %arg5: memref<1x128xf32, #tpu.memory_space<vmem>>, %arg6: memref<128x128xf32, #tpu.memory_space<vmem>>, %arg7: memref<1x128xf32, #tpu.memory_space<vmem>>, %arg8: memref<8x128xf32, #tpu.memory_space<vmem>>) attributes {dimension_semantics = [#tpu.dimension_semantics<parallel>], iteration_bounds = array<i64: 1>, scalar_prefetch = 0 : i64, scratch_operands = 0 : i64, tpu.core_type = #tpu.core_type<tc>, window_params = [{transform_indices = @transform_0, window_bounds = array<i64: 8, 128>}, {pipeline_mode = #tpu.pipeline_mode<synchronous>, transform_indices = @transform_1, window_bounds = array<i64: 128, 128>}, {pipeline_mode = #tpu.pipeline_mode<synchronous>, transform_indices = @transform_2, window_bounds = array<i64: 1, 128>}, {pipeline_mode = #tpu.pipeline_mode<synchronous>, transform_indices = @transform_3, window_bounds = array<i64: 128, 128>}, {pipeline_mode = #tpu.pipeline_mode<synchronous>, transform_indices = @transform_4, window_bounds = array<i64: 1, 128>}, {pipeline_mode = #tpu.pipeline_mode<synchronous>, transform_indices = @transform_5, window_bounds = array<i64: 128, 128>}, {pipeline_mode = #tpu.pipeline_mode<synchronous>, transform_indices = @transform_6, window_bounds = array<i64: 1, 128>}, {transform_indices = @transform_7, window_bounds = array<i64: 8, 128>}]} {
    %c0 = arith.constant 0 : index
    %c0_0 = arith.constant 0 : index
    %0 = vector.load %arg1[%c0, %c0_0] : memref<8x128xf32, #tpu.memory_space<vmem>>, vector<8x128xf32>
    %c0_1 = arith.constant 0 : index
    %c0_2 = arith.constant 0 : index
    %1 = vector.load %arg2[%c0_1, %c0_2] : memref<128x128xf32, #tpu.memory_space<vmem>>, vector<128x128xf32>
    %cst = arith.constant dense<0.000000e+00> : vector<8x128xf32>
    %2 = tpu.matmul %0, %1, %cst {dimension_numbers = #tpu.dot_dimension_numbers<[1], [0], [0], [1], [0, 0, 1, 1], [], []>} : vector<8x128xf32>, vector<128x128xf32>, vector<8x128xf32> -> vector<8x128xf32>
    %c0_3 = arith.constant 0 : index
    %c0_4 = arith.constant 0 : index
    %3 = vector.load %arg3[%c0_3, %c0_4] : memref<1x128xf32, #tpu.memory_space<vmem>>, vector<1x128xf32>
    %4 = vector.broadcast %3 : vector<1x128xf32> to vector<8x128xf32>
    %5 = arith.addf %2, %4 : vector<8x128xf32>
    %cst_5 = arith.constant 0.000000e+00 : f32
    %6 = vector.broadcast %cst_5 : f32 to vector<8x128xf32>
    %7 = arith.maximumf %5, %6 : vector<8x128xf32>
    %c0_6 = arith.constant 0 : index
    %c0_7 = arith.constant 0 : index
    %8 = vector.load %arg4[%c0_6, %c0_7] : memref<128x128xf32, #tpu.memory_space<vmem>>, vector<128x128xf32>
    %cst_8 = arith.constant dense<0.000000e+00> : vector<8x128xf32>
    %9 = tpu.matmul %7, %8, %cst_8 {dimension_numbers = #tpu.dot_dimension_numbers<[1], [0], [0], [1], [0, 0, 1, 1], [], []>} : vector<8x128xf32>, vector<128x128xf32>, vector<8x128xf32> -> vector<8x128xf32>
    %c0_9 = arith.constant 0 : index
    %c0_10 = arith.constant 0 : index
    %10 = vector.load %arg5[%c0_9, %c0_10] : memref<1x128xf32, #tpu.memory_space<vmem>>, vector<1x128xf32>
    %11 = vector.broadcast %10 : vector<1x128xf32> to vector<8x128xf32>
    %12 = arith.addf %9, %11 : vector<8x128xf32>
    %cst_11 = arith.constant 0.000000e+00 : f32
    %13 = vector.broadcast %cst_11 : f32 to vector<8x128xf32>
    %14 = arith.maximumf %12, %13 : vector<8x128xf32>
    %c0_12 = arith.constant 0 : index
    %c0_13 = arith.constant 0 : index
    %15 = vector.load %arg6[%c0_12, %c0_13] : memref<128x128xf32, #tpu.memory_space<vmem>>, vector<128x128xf32>
    %cst_14 = arith.constant dense<0.000000e+00> : vector<8x128xf32>
    %16 = tpu.matmul %14, %15, %cst_14 {dimension_numbers = #tpu.dot_dimension_numbers<[1], [0], [0], [1], [0, 0, 1, 1], [], []>} : vector<8x128xf32>, vector<128x128xf32>, vector<8x128xf32> -> vector<8x128xf32>
    %c0_15 = arith.constant 0 : index
    %c0_16 = arith.constant 0 : index
    %17 = vector.load %arg7[%c0_15, %c0_16] : memref<1x128xf32, #tpu.memory_space<vmem>>, vector<1x128xf32>
    %18 = vector.broadcast %17 : vector<1x128xf32> to vector<8x128xf32>
    %19 = arith.addf %16, %18 : vector<8x128xf32>
    %c0_17 = arith.constant 0 : index
    %c0_18 = arith.constant 0 : index
    %20 = vector.load %arg8[%c0_17, %c0_18] : memref<8x128xf32, #tpu.memory_space<vmem>>, vector<8x128xf32>
    tpu.vector_store %arg8[%c0_17, %c0_18], %19 {strides = array<i32>} : memref<8x128xf32, #tpu.memory_space<vmem>>, vector<8x128xf32>,
    return
  }
  func.func @transform_0(%arg0: i32) -> (i32, i32) {
    %c0_i32 = arith.constant 0 : i32
    %c0_i32_0 = arith.constant 0 : i32
    return %arg0, %c0_i32 : i32, i32
  }
  func.func @transform_1(%arg0: i32) -> (i32, i32) {
    %c0_i32 = arith.constant 0 : i32
    %c0_i32_0 = arith.constant 0 : i32
    %c0_i32_1 = arith.constant 0 : i32
    return %c0_i32, %c0_i32_0 : i32, i32
  }
  func.func @transform_2(%arg0: i32) -> (i32, i32) {
    %c0_i32 = arith.constant 0 : i32
    %c0_i32_0 = arith.constant 0 : i32
    %c0_i32_1 = arith.constant 0 : i32
    return %c0_i32, %c0_i32_0 : i32, i32
  }
  func.func @transform_3(%arg0: i32) -> (i32, i32) {
    %c0_i32 = arith.constant 0 : i32
    %c0_i32_0 = arith.constant 0 : i32
    %c0_i32_1 = arith.constant 0 : i32
    return %c0_i32, %c0_i32_0 : i32, i32
  }
  func.func @transform_4(%arg0: i32) -> (i32, i32) {
    %c0_i32 = arith.constant 0 : i32
    %c0_i32_0 = arith.constant 0 : i32
    %c0_i32_1 = arith.constant 0 : i32
    return %c0_i32, %c0_i32_0 : i32, i32
  }
  func.func @transform_5(%arg0: i32) -> (i32, i32) {
    %c0_i32 = arith.constant 0 : i32
    %c0_i32_0 = arith.constant 0 : i32
    %c0_i32_1 = arith.constant 0 : i32
    return %c0_i32, %c0_i32_0 : i32, i32
  }
  func.func @transform_6(%arg0: i32) -> (i32, i32) {
    %c0_i32 = arith.constant 0 : i32
    %c0_i32_0 = arith.constant 0 : i32
    %c0_i32_1 = arith.constant 0 : i32
    return %c0_i32, %c0_i32_0 : i32, i32
  }
  func.func @transform_7(%arg0: i32) -> (i32, i32) {
    %c0_i32 = arith.constant 0 : i32
    %c0_i32_0 = arith.constant 0 : i32
    return %arg0, %c0_i32 : i32, i32
  }
}

</mosaic_0001>

<llo_original>
// kernel: tpu_custom_call.1
$region0: #{tpu_custom_call.1}
  #allocation0 [shape = 'u32[]', space=smem, size = 0x4, offset = 0x4, fixed_abs, tag = 'smem constant byte address 0x4 - core index']
  #allocation1 [shape = 'u32[144,128]{1,0:T(1,128)}', space=vmem, size = 0x12000, scoped, tag = 'internal scratch']
  %s0 = inlined_call_operand.hbm [shape: f32[2,128], index: 0, kind: input, shape index: {}]
  %s1 = inlined_call_operand.hbm [shape: f32[128,128], index: 1, kind: input, shape index: {}]
  %s2 = inlined_call_operand.vmem [shape: f32[1,128], index: 2, kind: input, shape index: {}]
  %s3 = inlined_call_operand.hbm [shape: f32[128,128], index: 3, kind: input, shape index: {}]
  %s4 = inlined_call_operand.vmem [shape: f32[1,128], index: 4, kind: input, shape index: {}]
  %s5 = inlined_call_operand.hbm [shape: f32[128,128], index: 5, kind: input, shape index: {}]
  %s6 = inlined_call_operand.vmem [shape: f32[1,128], index: 6, kind: input, shape index: {}]
  %s7 = inlined_call_operand.hbm [shape: f32[2,128], index: 7, kind: output, shape index: {}]
  %s8 = sld [smem:[#allocation0]]
  $region54: #{tpu_custom_call.1} parent=0
    _
  %s10 = ssub.s32 1, %s8
  %s11 = scalar_select 0, %s10, %s8
  $region1: #{tpu_custom_call.1} parent=0
    #allocation2 [shape = 'u8[4096]{0}', space=vmem, size = 0x1000, scoped, tag = 'input window, operand 0, single buffered']
    #allocation3 [shape = 's32[1]{0}', space=sflag, size = 0x4, scoped, tag = 'scoped memory for tpu_custom_call.1']
    #allocation4 [shape = 's32[1]{0}', space=sflag, size = 0x4, scoped, tag = 'scoped memory for tpu_custom_call.1']
    #allocation5 [shape = 'u8[65536]{0}', space=vmem, size = 0x10000, scoped, tag = 'input window, operand 1, single buffered']
    #allocation6 [shape = 's32[1]{0}', space=sflag, size = 0x4, scoped, tag = 'scoped memory for tpu_custom_call.1']
    #allocation7 [shape = 'u8[65536]{0}', space=vmem, size = 0x10000, scoped, tag = 'input window, operand 3, single buffered']
    #allocation8 [shape = 'u8[65536]{0}', space=vmem, size = 0x10000, scoped, tag = 'input window, operand 5, single buffered']
    #allocation9 [shape = 's32[1]{0}', space=sflag, size = 0x4, scoped, tag = 'scoped memory for tpu_custom_call.1']
    #allocation10 [shape = 'u8[4096]{0}', space=vmem, size = 0x1000, scoped, tag = 'output window, operand 0, single buffered']
    %12 = vsyncpa [#allocation3], 0
    %13 = vsyncpa [#allocation6], 0
    %14 = vsyncpa [#allocation9], 0
    %15 = vsyncpa [#allocation4], 0
    // Predicated region
    $region2: #{tpu_custom_call.1} parent=1 // pred_check
      _
    $region3: #{tpu_custom_call.1} parent=1 // pred_check_branch
      %17 = sbr.rel (0) target = $region5
    $region4: #{tpu_custom_call.1} parent=1 // pred_region
      %s19 = ssub.s32 128, 32
      %20 = vsyncadd [#allocation3], %s19
      %s21 = sshll.u32 [#allocation2], 4
      %s22 = int_to_ptr.vmem [resolvable:$true] %s21
      %27 = dma.hbm_to_vmem [thread:$0]  %s0, 32, %s22, [#allocation3], 32, 32, 2
    $region5: #{tpu_custom_call.1} parent=1 // pred_fallthru
      _
    // Predicated region
    $region6: #{tpu_custom_call.1} parent=1 // pred_check
      _
    $region7: #{tpu_custom_call.1} parent=1 // pred_check_branch
      %29 = sbr.rel (0) target = $region9
    $region8: #{tpu_custom_call.1} parent=1 // pred_region
      %s31 = ssub.s32 2048, 2048
      %32 = vsyncadd [#allocation6], %s31
      %s33 = sshll.u32 [#allocation5], 4
      %s34 = int_to_ptr.vmem [resolvable:$true] %s33
      %39 = dma.hbm_to_vmem [thread:$0]  %s1, 2048, %s34, [#allocation6], 128, 128, 8
    $region9: #{tpu_custom_call.1} parent=1 // pred_fallthru
      _
    // Predicated region
    $region10: #{tpu_custom_call.1} parent=1 // pred_check
      _
    $region11: #{tpu_custom_call.1} parent=1 // pred_check_branch
      %41 = sbr.rel (0) target = $region13
    $region12: #{tpu_custom_call.1} parent=1 // pred_region
      _
    $region13: #{tpu_custom_call.1} parent=1 // pred_fallthru
      _
    // Predicated region
    $region14: #{tpu_custom_call.1} parent=1 // pred_check
      _
    $region15: #{tpu_custom_call.1} parent=1 // pred_check_branch
      %43 = sbr.rel (0) target = $region17
    $region16: #{tpu_custom_call.1} parent=1 // pred_region
      %s45 = ssub.s32 2048, 2048
      %46 = vsyncadd [#allocation6], %s45
      %s47 = sshll.u32 [#allocation7], 4
      %s48 = int_to_ptr.vmem [resolvable:$true] %s47
      %53 = dma.hbm_to_vmem [thread:$0]  %s3, 2048, %s48, [#allocation6], 128, 128, 8
    $region17: #{tpu_custom_call.1} parent=1 // pred_fallthru
      _
    // Predicated region
    $region18: #{tpu_custom_call.1} parent=1 // pred_check
      _
    $region19: #{tpu_custom_call.1} parent=1 // pred_check_branch
      %55 = sbr.rel (0) target = $region21
    $region20: #{tpu_custom_call.1} parent=1 // pred_region
      _
    $region21: #{tpu_custom_call.1} parent=1 // pred_fallthru
      _
    // Predicated region
    $region22: #{tpu_custom_call.1} parent=1 // pred_check
      _
    $region23: #{tpu_custom_call.1} parent=1 // pred_check_branch
      %57 = sbr.rel (0) target = $region25
    $region24: #{tpu_custom_call.1} parent=1 // pred_region
      %s59 = ssub.s32 2048, 2048
      %60 = vsyncadd [#allocation9], %s59
      %s61 = sshll.u32 [#allocation8], 4
      %s62 = int_to_ptr.vmem [resolvable:$true] %s61
      %67 = dma.hbm_to_vmem [thread:$0]  %s5, 2048, %s62, [#allocation9], 128, 128, 8
    $region25: #{tpu_custom_call.1} parent=1 // pred_fallthru
      _
    // Predicated region
    $region26: #{tpu_custom_call.1} parent=1 // pred_check
      _
    $region27: #{tpu_custom_call.1} parent=1 // pred_check_branch
      %69 = sbr.rel (0) target = $region29
    $region28: #{tpu_custom_call.1} parent=1 // pred_region
      _
    $region29: #{tpu_custom_call.1} parent=1 // pred_fallthru
      _
    // Predicated region
    $region30: #{tpu_custom_call.1} parent=1 // pred_check
      _
    $region31: #{tpu_custom_call.1} parent=1 // pred_check_branch
      %71 = sbr.rel (0) target = $region33
    $region32: #{tpu_custom_call.1} parent=1 // pred_region
      %72 = dma.done [#allocation3], 128
    $region33: #{tpu_custom_call.1} parent=1 // pred_fallthru
      _
    // Predicated region
    $region34: #{tpu_custom_call.1} parent=1 // pred_check
      _
    $region35: #{tpu_custom_call.1} parent=1 // pred_check_branch
      %74 = sbr.rel (0) target = $region37
    $region36: #{tpu_custom_call.1} parent=1 // pred_region
      %75 = dma.done [#allocation6], 2048
    $region37: #{tpu_custom_call.1} parent=1 // pred_fallthru
      _
    // Predicated region
    $region38: #{tpu_custom_call.1} parent=1 // pred_check
      _
    $region39: #{tpu_custom_call.1} parent=1 // pred_check_branch
      %77 = sbr.rel (0) target = $region41
    $region40: #{tpu_custom_call.1} parent=1 // pred_region
      %78 = dma.done [#allocation6], 2048
    $region41: #{tpu_custom_call.1} parent=1 // pred_fallthru
      _
    // Predicated region
    $region42: #{tpu_custom_call.1} parent=1 // pred_check
      _
    $region43: #{tpu_custom_call.1} parent=1 // pred_check_branch
      %80 = sbr.rel (0) target = $region45
    $region44: #{tpu_custom_call.1} parent=1 // pred_region
      %81 = dma.done [#allocation9], 2048
    $region45: #{tpu_custom_call.1} parent=1 // pred_fallthru
      _
    %v82 = vld [vmem:[#allocation2] sm:$0xff]
    %v83 = vld [vmem:[#allocation5] sm:$0xff]
    %v84 = vld [vmem:[#allocation5 + $0x8] sm:$0xff]
    %v85 = vld [vmem:[#allocation5 + $0x10] sm:$0xff]
    %v86 = vld [vmem:[#allocation5 + $0x18] sm:$0xff]
    %v87 = vld [vmem:[#allocation5 + $0x20] sm:$0xff]
    %v88 = vld [vmem:[#allocation5 + $0x28] sm:$0xff]
    %v89 = vld [vmem:[#allocation5 + $0x30] sm:$0xff]
    %v90 = vld [vmem:[#allocation5 + $0x38] sm:$0xff]
    %v91 = vld [vmem:[#allocation5 + $0x40] sm:$0xff]
    %v92 = vld [vmem:[#allocation5 + $0x48] sm:$0xff]
    %v93 = vld [vmem:[#allocation5 + $0x50] sm:$0xff]
    %v94 = vld [vmem:[#allocation5 + $0x58] sm:$0xff]
    %v95 = vld [vmem:[#allocation5 + $0x60] sm:$0xff]
    %v96 = vld [vmem:[#allocation5 + $0x68] sm:$0xff]
    %v97 = vld [vmem:[#allocation5 + $0x70] sm:$0xff]
    %v98 = vld [vmem:[#allocation5 + $0x78] sm:$0xff]
    %v99 = vld [vmem:[%s2] sm:$0x1]
    %v101 = vlaneseq
    %v102 = vshrl.u32 %v101, 7
    %v103 = vsub.s32 0, %v102
    %v104 = vrot.slane %v99, %v103
    %106 = vmatprep.subr.mxu0 0.0
    %107 = vmatpush1.msra.mxu0 %v83
    %108 = vmatprep.subr.mxu0 0.0
    %109 = vmatpush1.msra.mxu0 %v84
    %110 = vmatprep.subr.mxu0 0.0
    %111 = vmatpush1.msra.mxu0 %v85
    %112 = vmatprep.subr.mxu0 0.0
    %113 = vmatpush1.msra.mxu0 %v86
    %114 = vmatprep.subr.mxu0 0.0
    %115 = vmatpush1.msra.mxu0 %v87
    %116 = vmatprep.subr.mxu0 0.0
    %117 = vmatpush1.msra.mxu0 %v88
    %118 = vmatprep.subr.mxu0 0.0
    %119 = vmatpush1.msra.mxu0 %v89
    %120 = vmatprep.subr.mxu0 0.0
    %121 = vmatpush1.msra.mxu0 %v90
    %122 = vmatprep.subr.mxu0 0.0
    %123 = vmatpush1.msra.mxu0 %v91
    %124 = vmatprep.subr.mxu0 0.0
    %125 = vmatpush1.msra.mxu0 %v92
    %126 = vmatprep.subr.mxu0 0.0
    %127 = vmatpush1.msra.mxu0 %v93
    %128 = vmatprep.subr.mxu0 0.0
    %129 = vmatpush1.msra.mxu0 %v94
    %130 = vmatprep.subr.mxu0 0.0
    %131 = vmatpush1.msra.mxu0 %v95
    %132 = vmatprep.subr.mxu0 0.0
    %133 = vmatpush1.msra.mxu0 %v96
    %134 = vmatprep.subr.mxu0 0.0
    %135 = vmatpush1.msra.mxu0 %v97
    %136 = vmatprep.subr.mxu0 0.0
    %137 = vmatpush1.msra.mxu0 %v98
    %138 = vmatprep.subr.mxu0 0.0
    %139 = vmatpush1.msra.mxu0 0.0
    %140 = vmatprep.subr.mxu0 0.0
    %141 = vmatpush1.msra.mxu0 0.0
    %142 = vmatprep.subr.mxu0 0.0
    %143 = vmatpush1.msra.mxu0 0.0
    %144 = vmatprep.subr.mxu0 0.0
    %145 = vmatpush1.msra.mxu0 0.0
    %146 = vmatprep.subr.mxu0 0.0
    %147 = vmatpush1.msra.mxu0 0.0
    %148 = vmatprep.subr.mxu0 0.0
    %149 = vmatpush1.msra.mxu0 0.0
    %150 = vmatprep.subr.mxu0 0.0
    %151 = vmatpush1.msra.mxu0 0.0
    %152 = vmatprep.subr.mxu0 0.0
    %153 = vmatpush1.msra.mxu0 0.0
    %154 = vmatprep.subr.mxu0 0.0
    %155 = vmatpush1.msra.mxu0 0.0
    %156 = vmatprep.subr.mxu0 0.0
    %157 = vmatpush1.msra.mxu0 0.0
    %158 = vmatprep.subr.mxu0 0.0
    %159 = vmatpush1.msra.mxu0 0.0
    %160 = vmatprep.subr.mxu0 0.0
    %161 = vmatpush1.msra.mxu0 0.0
    %162 = vmatprep.subr.mxu0 0.0
    %163 = vmatpush1.msra.mxu0 0.0
    %164 = vmatprep.subr.mxu0 0.0
    %165 = vmatpush1.msra.mxu0 0.0
    %166 = vmatprep.subr.mxu0 0.0
    %167 = vmatpush1.msra.mxu0 0.0
    %168 = vmatprep.subr.mxu0 0.0
    %169 = vmatpush1.msra.mxu0 0.0
    %170 = vmatprep.mubr.f32.mxu0 0.0
    %171 = vmatmul.mubr.f32.gmra.mrb[0].mxu0 %v82
    %v172 = vpop.f32.mrb[0].mxu0
    %v173 = vadd.f32 %v104, %v172
    %v174 = vpop.f32.mrb[0].mxu0
    %175 = vdwg.mxu0
    %v176 = vmax.f32 %v173, 0.0
    %v177 = vld [vmem:[#allocation7] sm:$0xff]
    %v178 = vld [vmem:[#allocation7 + $0x8] sm:$0xff]
    %v179 = vld [vmem:[#allocation7 + $0x10] sm:$0xff]
    %v180 = vld [vmem:[#allocation7 + $0x18] sm:$0xff]
    %v181 = vld [vmem:[#allocation7 + $0x20] sm:$0xff]
    %v182 = vld [vmem:[#allocation7 + $0x28] sm:$0xff]
    %v183 = vld [vmem:[#allocation7 + $0x30] sm:$0xff]
    %v184 = vld [vmem:[#allocation7 + $0x38] sm:$0xff]
    %v185 = vld [vmem:[#allocation7 + $0x40] sm:$0xff]
    %v186 = vld [vmem:[#allocation7 + $0x48] sm:$0xff]
    %v187 = vld [vmem:[#allocation7 + $0x50] sm:$0xff]
    %v188 = vld [vmem:[#allocation7 + $0x58] sm:$0xff]
    %v189 = vld [vmem:[#allocation7 + $0x60] sm:$0xff]
    %v190 = vld [vmem:[#allocation7 + $0x68] sm:$0xff]
    %v191 = vld [vmem:[#allocation7 + $0x70] sm:$0xff]
    %v192 = vld [vmem:[#allocation7 + $0x78] sm:$0xff]
    %v193 = vld [vmem:[%s4] sm:$0x1]
    %v195 = vlaneseq
    %v196 = vshrl.u32 %v195, 7
    %v197 = vsub.s32 0, %v196
    %v198 = vrot.slane %v193, %v197
    %200 = vmatprep.subr.mxu0 0.0
    %201 = vmatpush1.msra.mxu0 %v177
    %202 = vmatprep.subr.mxu0 0.0
    %203 = vmatpush1.msra.mxu0 %v178
    %204 = vmatprep.subr.mxu0 0.0
    %205 = vmatpush1.msra.mxu0 %v179
    %206 = vmatprep.subr.mxu0 0.0
    %207 = vmatpush1.msra.mxu0 %v180
    %208 = vmatprep.subr.mxu0 0.0
    %209 = vmatpush1.msra.mxu0 %v181
    %210 = vmatprep.subr.mxu0 0.0
    %211 = vmatpush1.msra.mxu0 %v182
    %212 = vmatprep.subr.mxu0 0.0
    %213 = vmatpush1.msra.mxu0 %v183
    %214 = vmatprep.subr.mxu0 0.0
    %215 = vmatpush1.msra.mxu0 %v184
    %216 = vmatprep.subr.mxu0 0.0
    %217 = vmatpush1.msra.mxu0 %v185
    %218 = vmatprep.subr.mxu0 0.0
    %219 = vmatpush1.msra.mxu0 %v186
    %220 = vmatprep.subr.mxu0 0.0
    %221 = vmatpush1.msra.mxu0 %v187
    %222 = vmatprep.subr.mxu0 0.0
    %223 = vmatpush1.msra.mxu0 %v188
    %224 = vmatprep.subr.mxu0 0.0
    %225 = vmatpush1.msra.mxu0 %v189
    %226 = vmatprep.subr.mxu0 0.0
    %227 = vmatpush1.msra.mxu0 %v190
    %228 = vmatprep.subr.mxu0 0.0
    %229 = vmatpush1.msra.mxu0 %v191
    %230 = vmatprep.subr.mxu0 0.0
    %231 = vmatpush1.msra.mxu0 %v192
    %232 = vmatprep.subr.mxu0 0.0
    %233 = vmatpush1.msra.mxu0 0.0
    %234 = vmatprep.subr.mxu0 0.0
    %235 = vmatpush1.msra.mxu0 0.0
    %236 = vmatprep.subr.mxu0 0.0
    %237 = vmatpush1.msra.mxu0 0.0
    %238 = vmatprep.subr.mxu0 0.0
    %239 = vmatpush1.msra.mxu0 0.0
    %240 = vmatprep.subr.mxu0 0.0
    %241 = vmatpush1.msra.mxu0 0.0
    %242 = vmatprep.subr.mxu0 0.0
    %243 = vmatpush1.msra.mxu0 0.0
    %244 = vmatprep.subr.mxu0 0.0
    %245 = vmatpush1.msra.mxu0 0.0
    %246 = vmatprep.subr.mxu0 0.0
    %247 = vmatpush1.msra.mxu0 0.0
    %248 = vmatprep.subr.mxu0 0.0
    %249 = vmatpush1.msra.mxu0 0.0
    %250 = vmatprep.subr.mxu0 0.0
    %251 = vmatpush1.msra.mxu0 0.0
    %252 = vmatprep.subr.mxu0 0.0
    %253 = vmatpush1.msra.mxu0 0.0
    %254 = vmatprep.subr.mxu0 0.0
    %255 = vmatpush1.msra.mxu0 0.0
    %256 = vmatprep.subr.mxu0 0.0
    %257 = vmatpush1.msra.mxu0 0.0
    %258 = vmatprep.subr.mxu0 0.0
    %259 = vmatpush1.msra.mxu0 0.0
    %260 = vmatprep.subr.mxu0 0.0
    %261 = vmatpush1.msra.mxu0 0.0
    %262 = vmatprep.subr.mxu0 0.0
    %263 = vmatpush1.msra.mxu0 0.0
    %264 = vmatprep.mubr.f32.mxu0 0.0
    %265 = vmatmul.mubr.f32.gmra.mrb[0].mxu0 %v176
    %v266 = vpop.f32.mrb[0].mxu0
    %v267 = vadd.f32 %v198, %v266
    %v268 = vpop.f32.mrb[0].mxu0
    %269 = vdwg.mxu0
    %v270 = vmax.f32 %v267, 0.0
    %v271 = vld [vmem:[#allocation8] sm:$0xff]
    %v272 = vld [vmem:[#allocation8 + $0x8] sm:$0xff]
    %v273 = vld [vmem:[#allocation8 + $0x10] sm:$0xff]
    %v274 = vld [vmem:[#allocation8 + $0x18] sm:$0xff]
    %v275 = vld [vmem:[#allocation8 + $0x20] sm:$0xff]
    %v276 = vld [vmem:[#allocation8 + $0x28] sm:$0xff]
    %v277 = vld [vmem:[#allocation8 + $0x30] sm:$0xff]
    %v278 = vld [vmem:[#allocation8 + $0x38] sm:$0xff]
    %v279 = vld [vmem:[#allocation8 + $0x40] sm:$0xff]
    %v280 = vld [vmem:[#allocation8 + $0x48] sm:$0xff]
    %v281 = vld [vmem:[#allocation8 + $0x50] sm:$0xff]
    %v282 = vld [vmem:[#allocation8 + $0x58] sm:$0xff]
    %v283 = vld [vmem:[#allocation8 + $0x60] sm:$0xff]
    %v284 = vld [vmem:[#allocation8 + $0x68] sm:$0xff]
    %v285 = vld [vmem:[#allocation8 + $0x70] sm:$0xff]
    %v286 = vld [vmem:[#allocation8 + $0x78] sm:$0xff]
    %v287 = vld [vmem:[%s6] sm:$0x1]
    %v289 = vlaneseq
    %v290 = vshrl.u32 %v289, 7
    %v291 = vsub.s32 0, %v290
    %v292 = vrot.slane %v287, %v291
    %294 = vmatprep.subr.mxu0 0.0
    %295 = vmatpush1.msra.mxu0 %v271
    %296 = vmatprep.subr.mxu0 0.0
    %297 = vmatpush1.msra.mxu0 %v272
    %298 = vmatprep.subr.mxu0 0.0
    %299 = vmatpush1.msra.mxu0 %v273
    %300 = vmatprep.subr.mxu0 0.0
    %301 = vmatpush1.msra.mxu0 %v274
    %302 = vmatprep.subr.mxu0 0.0
    %303 = vmatpush1.msra.mxu0 %v275
    %304 = vmatprep.subr.mxu0 0.0
    %305 = vmatpush1.msra.mxu0 %v276
    %306 = vmatprep.subr.mxu0 0.0
    %307 = vmatpush1.msra.mxu0 %v277
    %308 = vmatprep.subr.mxu0 0.0
    %309 = vmatpush1.msra.mxu0 %v278
    %310 = vmatprep.subr.mxu0 0.0
    %311 = vmatpush1.msra.mxu0 %v279
    %312 = vmatprep.subr.mxu0 0.0
    %313 = vmatpush1.msra.mxu0 %v280
    %314 = vmatprep.subr.mxu0 0.0
    %315 = vmatpush1.msra.mxu0 %v281
    %316 = vmatprep.subr.mxu0 0.0
    %317 = vmatpush1.msra.mxu0 %v282
    %318 = vmatprep.subr.mxu0 0.0
    %319 = vmatpush1.msra.mxu0 %v283
    %320 = vmatprep.subr.mxu0 0.0
    %321 = vmatpush1.msra.mxu0 %v284
    %322 = vmatprep.subr.mxu0 0.0
    %323 = vmatpush1.msra.mxu0 %v285
    %324 = vmatprep.subr.mxu0 0.0
    %325 = vmatpush1.msra.mxu0 %v286
    %326 = vmatprep.subr.mxu0 0.0
    %327 = vmatpush1.msra.mxu0 0.0
    %328 = vmatprep.subr.mxu0 0.0
    %329 = vmatpush1.msra.mxu0 0.0
    %330 = vmatprep.subr.mxu0 0.0
    %331 = vmatpush1.msra.mxu0 0.0
    %332 = vmatprep.subr.mxu0 0.0
    %333 = vmatpush1.msra.mxu0 0.0
    %334 = vmatprep.subr.mxu0 0.0
    %335 = vmatpush1.msra.mxu0 0.0
    %336 = vmatprep.subr.mxu0 0.0
    %337 = vmatpush1.msra.mxu0 0.0
    %338 = vmatprep.subr.mxu0 0.0
    %339 = vmatpush1.msra.mxu0 0.0
    %340 = vmatprep.subr.mxu0 0.0
    %341 = vmatpush1.msra.mxu0 0.0
    %342 = vmatprep.subr.mxu0 0.0
    %343 = vmatpush1.msra.mxu0 0.0
    %344 = vmatprep.subr.mxu0 0.0
    %345 = vmatpush1.msra.mxu0 0.0
    %346 = vmatprep.subr.mxu0 0.0
    %347 = vmatpush1.msra.mxu0 0.0
    %348 = vmatprep.subr.mxu0 0.0
    %349 = vmatpush1.msra.mxu0 0.0
    %350 = vmatprep.subr.mxu0 0.0
    %351 = vmatpush1.msra.mxu0 0.0
    %352 = vmatprep.subr.mxu0 0.0
    %353 = vmatpush1.msra.mxu0 0.0
    %354 = vmatprep.subr.mxu0 0.0
    %355 = vmatpush1.msra.mxu0 0.0
    %356 = vmatprep.subr.mxu0 0.0
    %357 = vmatpush1.msra.mxu0 0.0
    %358 = vmatprep.mubr.f32.mxu0 0.0
    %359 = vmatmul.mubr.f32.gmra.mrb[0].mxu0 %v270
    %v360 = vpop.f32.mrb[0].mxu0
    %v361 = vadd.f32 %v292, %v360
    %v362 = vpop.f32.mrb[0].mxu0
    %363 = vdwg.mxu0
    %364 = vst [vmem:[#allocation10] sm:$0xff] %v361
    // Predicated region
    $region46: #{tpu_custom_call.1} parent=1 // pred_check
      _
    $region47: #{tpu_custom_call.1} parent=1 // pred_check_branch
      %366 = sbr.rel (0) target = $region49
    $region48: #{tpu_custom_call.1} parent=1 // pred_region
      %s368 = ssub.s32 128, 32
      %369 = vsyncadd [#allocation4], %s368
      %s370 = sshll.u32 [#allocation10], 4
      %s371 = int_to_ptr.vmem [resolvable:$true] %s370
      %376 = dma.vmem_to_hbm [thread:$0]  %s371, 32, %s7, [#allocation4], 32, 32, 2
    $region49: #{tpu_custom_call.1} parent=1 // pred_fallthru
      _
    // Predicated region
    $region50: #{tpu_custom_call.1} parent=1 // pred_check
      _
    $region51: #{tpu_custom_call.1} parent=1 // pred_check_branch
      %378 = sbr.rel (0) target = $region53
    $region52: #{tpu_custom_call.1} parent=1 // pred_region
      %379 = dma.done [#allocation4], 128
    $region53: #{tpu_custom_call.1} parent=1 // pred_fallthru
      _
    %380 = vsyncpa [#allocation3], 1
    %381 = vsyncpa [#allocation6], 1
    %382 = vsyncpa [#allocation9], 1
    %383 = vsyncpa [#allocation4], 1

</llo_original>
